<compile_context>
chip_gen: v7x
topology: tpu7x:2x2x1
jax: 0.10.0
libtpu: 0.0.40
codegen_flags: <defaults>
</compile_context>

<pallas_src>
import functools
import math

import jax
import jax.numpy as jnp
from jax import lax
from jax.experimental import pallas as pl
from jax.experimental.pallas import tpu as pltpu


def _round_up(x, m):
    return ((x + m - 1) // m) * m


def _vmem_capacity_bytes():
    """Per-core VMEM capacity; conservative (v7x-sized) fallback if query fails."""
    try:
        return int(pltpu.get_tpu_info().vmem_capacity_bytes)
    except Exception:
        return 64 << 20


# --------------------------------------------------------------------------- #
# Fast path: whole embedding table resident in VMEM, T tokens per grid step.
# --------------------------------------------------------------------------- #
def _vmem_gather_kernel(ids_smem_ref, table_ref, out_ref, *, scale, block_tokens):
    # ids_smem_ref: (N_pad,) int32 in SMEM (scalar prefetch).
    # table_ref:    (V, D) embedding table, resident in VMEM (constant block).
    # out_ref:      (T, D) output block for this grid step.
    base = pl.program_id(0) * block_tokens
    scale_v = jnp.asarray(scale, dtype=out_ref.dtype)

    unroll = 4  # block_tokens is always a multiple of 8, so this divides evenly.

    def body(t0, carry):
        # Small static unroll: 4 independent row copies per loop iteration so
        # the scheduler can interleave the scalar loads / VMEM copies.
        for u in range(unroll):
            t = t0 * unroll + u
            tok = ids_smem_ref[base + t]
            out_ref[pl.ds(t, 1), :] = table_ref[pl.ds(tok, 1), :] * scale_v
        return carry

    lax.fori_loop(0, block_tokens // unroll, body, 0)


def _embedding_vmem(flat_ids, table, scale, block_tokens):
    N = flat_ids.shape[0]
    V, D = table.shape
    itemsize = jnp.dtype(table.dtype).itemsize

    # Token block: multiple of 8 sublanes, capped at block_tokens.
    T = min(block_tokens, _round_up(N, 8))
    N_pad = _round_up(N, T)
    if N_pad != N:
        flat_ids = jnp.pad(flat_ids, (0, N_pad - N))  # pad with id 0 (valid row)
    num_tiles = N_pad // T

    grid_spec = pltpu.PrefetchScalarGridSpec(
        num_scalar_prefetch=1,          # flat ids -> SMEM, drives in-kernel gather
        grid=(num_tiles,),
        in_specs=[
            # Whole table, constant block index -> DMA'd once, stays resident.
            pl.BlockSpec((V, D), lambda i, ids_ref: (0, 0)),
        ],
        out_specs=pl.BlockSpec((T, D), lambda i, ids_ref: (i, 0)),
    )

    table_bytes = V * D * itemsize
    vmem_needed = 2 * table_bytes + 4 * T * D * itemsize + (2 << 20)
    vmem_limit = min(max(vmem_needed, 16 << 20), (_vmem_capacity_bytes() * 3) // 4)

    cost = pl.CostEstimate(
        flops=N_pad * D,
        transcendentals=0,
        bytes_accessed=table_bytes + N_pad * D * itemsize + N_pad * 4,
    )

    out_padded = pl.pallas_call(
        functools.partial(_vmem_gather_kernel, scale=scale, block_tokens=T),
        out_shape=jax.ShapeDtypeStruct((N_pad, D), table.dtype),
        grid_spec=grid_spec,
        compiler_params=pltpu.CompilerParams(
            # Output tiles are disjoint -> safe to shard across v7x's two TCs.
            dimension_semantics=("parallel",),
            vmem_limit_bytes=int(vmem_limit),
        ),
        cost_estimate=cost,
    )(flat_ids, table)

    return out_padded[:N]


# --------------------------------------------------------------------------- #
# Fallback: table stays in HBM; data-dependent row gather via pl.Element.
# --------------------------------------------------------------------------- #
def _hbm_row_kernel(ids_smem_ref, emb_row_ref, out_ref, *, scale):
    del ids_smem_ref  # already consumed by the gather index_map
    out_ref[...] = emb_row_ref[...] * jnp.asarray(scale, out_ref.dtype)


def _embedding_hbm(flat_ids, table, scale):
    N = flat_ids.shape[0]
    V, D = table.shape
    itemsize = jnp.dtype(table.dtype).itemsize

    grid_spec = pltpu.PrefetchScalarGridSpec(
        num_scalar_prefetch=1,
        grid=(N,),
        in_specs=[
            # Element-offset row index comes from the prefetched ids.
            pl.BlockSpec((pl.Element(1), D), lambda i, ids_ref: (ids_ref[i], 0)),
        ],
        out_specs=pl.BlockSpec((1, D), lambda i, ids_ref: (i, 0)),
    )
    cost = pl.CostEstimate(
        flops=N * D, transcendentals=0,
        bytes_accessed=2 * N * D * itemsize + N * 4)

    return pl.pallas_call(
        functools.partial(_hbm_row_kernel, scale=scale),
        out_shape=jax.ShapeDtypeStruct((N, D), table.dtype),
        grid_spec=grid_spec,
        compiler_params=pltpu.CompilerParams(
            dimension_semantics=("arbitrary",),  # data-dependent gather
        ),
        cost_estimate=cost,
    )(flat_ids, table)


def embedding_forward(ids, table, *, block_tokens=256):
    """ids: int array (...,), table: (V, D) -> (..., D) = table[ids] * sqrt(D)."""
    V, D = table.shape
    lead_shape = ids.shape
    N = math.prod(lead_shape)
    scale = math.sqrt(D)  # sqrt(model_dimension)

    # Clamp ids: OOB VMEM/DMA access on TPU is silent garbage or a chip fault.
    flat_ids = jnp.clip(ids.reshape(N).astype(jnp.int32), 0, V - 1)

    table_bytes = V * D * jnp.dtype(table.dtype).itemsize
    # Fast path whenever the (double-buffer-accounted) table fits the chip's
    # VMEM budget (64 MiB on v7x, 128 MiB on v5e/v6e).
    if table_bytes <= _vmem_capacity_bytes() // 4:
        out_flat = _embedding_vmem(flat_ids, table, scale, block_tokens)
    else:
        # TODO(synk): huge-vocab tables could additionally use blocked manual
        # double-buffered row DMAs; the per-row gather below is correct but
        # DMA-latency bound.
        out_flat = _embedding_hbm(flat_ids, table, scale)

    return out_flat.reshape(*lead_shape, D)


if __name__ == "__main__":
    # Small shapes consistent with the module: vocab=64, model_dimension=32,
    # batch=2, seq=8.
    VOCAB = 64
    D_MODEL = 32
    B, S = 2, 8

    key = jax.random.PRNGKey(0)
    k_tab, k_ids = jax.random.split(key)

    # nn.Embedding default init: weight ~ N(0, 1)
    table = jax.random.normal(k_tab, (VOCAB, D_MODEL), dtype=jnp.float32)
    ids = jax.random.randint(k_ids, (B, S), 0, VOCAB, dtype=jnp.int32)

    out = embedding_forward(ids, table)
    out = jax.block_until_ready(out)

    # Pure-JAX reference check.
    ref = jnp.take(table, ids, axis=0) * math.sqrt(D_MODEL)
    assert out.shape == (B, S, D_MODEL), out.shape
    assert out.dtype == jnp.float32, out.dtype
    assert jnp.allclose(out, ref, atol=1e-6, rtol=1e-6), "mismatch vs reference"

    print("KERNEL_OK")
</pallas_src>

<mosaic_0001>
module attributes {stable_mosaic.version = 11 : i64} {
  func.func @_vmem_gather_kernel(%arg0: i32, %arg1: memref<16xi32, #tpu.memory_space<smem>>, %arg2: memref<64x32xf32, #tpu.memory_space<vmem>>, %arg3: memref<16x32xf32, #tpu.memory_space<vmem>>) attributes {dimension_semantics = [#tpu.dimension_semantics<parallel>], iteration_bounds = array<i64: 1>, scalar_prefetch = 1 : i64, scratch_operands = 0 : i64, tpu.core_type = #tpu.core_type<tc>, window_params = [{pipeline_mode = #tpu.pipeline_mode<synchronous>, transform_indices = @transform_0, window_bounds = array<i64: 64, 32>}, {transform_indices = @transform_1, window_bounds = array<i64: 16, 32>}]} {
    %c16_i32 = arith.constant 16 : i32
    %0 = arith.muli %arg0, %c16_i32 : i32
    %cst = arith.constant 5.65685415 : f32
    %c0_i32 = arith.constant 0 : i32
    %c4_i32 = arith.constant 4 : i32
    %1 = arith.addi %c0_i32, %c4_i32 : i32
    %c1_i32 = arith.constant 1 : i32
    scf.for %arg4 = %c0_i32 to %1 step %c1_i32  : i32 {
      %c4_i32_1 = arith.constant 4 : i32
      %2 = arith.muli %arg4, %c4_i32_1 : i32
      %c0_i32_2 = arith.constant 0 : i32
      %3 = arith.addi %2, %c0_i32_2 : i32
      %4 = arith.addi %0, %3 : i32
      %5 = arith.index_cast %4 : i32 to index
      %6 = memref.load %arg1[%5] : memref<16xi32, #tpu.memory_space<smem>>
      %7 = arith.index_cast %6 : i32 to index
      %c0 = arith.constant 0 : index
      %8 = vector.load %arg2[%7, %c0] : memref<64x32xf32, #tpu.memory_space<vmem>>, vector<1x32xf32>
      %9 = vector.broadcast %cst : f32 to vector<1x32xf32>
      %10 = arith.mulf %8, %9 : vector<1x32xf32>
      %11 = arith.index_cast %3 : i32 to index
      %c0_3 = arith.constant 0 : index
      %12 = vector.load %arg3[%11, %c0_3] : memref<16x32xf32, #tpu.memory_space<vmem>>, vector<1x32xf32>
      tpu.vector_store %arg3[%11, %c0_3], %10 {strides = array<i32>} : memref<16x32xf32, #tpu.memory_space<vmem>>, vector<1x32xf32>,
      %c4_i32_4 = arith.constant 4 : i32
      %13 = arith.muli %arg4, %c4_i32_4 : i32
      %c1_i32_5 = arith.constant 1 : i32
      %14 = arith.addi %13, %c1_i32_5 : i32
      %15 = arith.addi %0, %14 : i32
      %16 = arith.index_cast %15 : i32 to index
      %17 = memref.load %arg1[%16] : memref<16xi32, #tpu.memory_space<smem>>
      %18 = arith.index_cast %17 : i32 to index
      %c0_6 = arith.constant 0 : index
      %19 = vector.load %arg2[%18, %c0_6] : memref<64x32xf32, #tpu.memory_space<vmem>>, vector<1x32xf32>
      %20 = vector.broadcast %cst : f32 to vector<1x32xf32>
      %21 = arith.mulf %19, %20 : vector<1x32xf32>
      %22 = arith.index_cast %14 : i32 to index
      %c0_7 = arith.constant 0 : index
      %23 = vector.load %arg3[%22, %c0_7] : memref<16x32xf32, #tpu.memory_space<vmem>>, vector<1x32xf32>
      tpu.vector_store %arg3[%22, %c0_7], %21 {strides = array<i32>} : memref<16x32xf32, #tpu.memory_space<vmem>>, vector<1x32xf32>,
      %c4_i32_8 = arith.constant 4 : i32
      %24 = arith.muli %arg4, %c4_i32_8 : i32
      %c2_i32 = arith.constant 2 : i32
      %25 = arith.addi %24, %c2_i32 : i32
      %26 = arith.addi %0, %25 : i32
      %27 = arith.index_cast %26 : i32 to index
      %28 = memref.load %arg1[%27] : memref<16xi32, #tpu.memory_space<smem>>
      %29 = arith.index_cast %28 : i32 to index
      %c0_9 = arith.constant 0 : index
      %30 = vector.load %arg2[%29, %c0_9] : memref<64x32xf32, #tpu.memory_space<vmem>>, vector<1x32xf32>
      %31 = vector.broadcast %cst : f32 to vector<1x32xf32>
      %32 = arith.mulf %30, %31 : vector<1x32xf32>
      %33 = arith.index_cast %25 : i32 to index
      %c0_10 = arith.constant 0 : index
      %34 = vector.load %arg3[%33, %c0_10] : memref<16x32xf32, #tpu.memory_space<vmem>>, vector<1x32xf32>
      tpu.vector_store %arg3[%33, %c0_10], %32 {strides = array<i32>} : memref<16x32xf32, #tpu.memory_space<vmem>>, vector<1x32xf32>,
      %c4_i32_11 = arith.constant 4 : i32
      %35 = arith.muli %arg4, %c4_i32_11 : i32
      %c3_i32 = arith.constant 3 : i32
      %36 = arith.addi %35, %c3_i32 : i32
      %37 = arith.addi %0, %36 : i32
      %38 = arith.index_cast %37 : i32 to index
      %39 = memref.load %arg1[%38] : memref<16xi32, #tpu.memory_space<smem>>
      %40 = arith.index_cast %39 : i32 to index
      %c0_12 = arith.constant 0 : index
      %41 = vector.load %arg2[%40, %c0_12] : memref<64x32xf32, #tpu.memory_space<vmem>>, vector<1x32xf32>
      %42 = vector.broadcast %cst : f32 to vector<1x32xf32>
      %43 = arith.mulf %41, %42 : vector<1x32xf32>
      %44 = arith.index_cast %36 : i32 to index
      %c0_13 = arith.constant 0 : index
      %45 = vector.load %arg3[%44, %c0_13] : memref<16x32xf32, #tpu.memory_space<vmem>>, vector<1x32xf32>
      tpu.vector_store %arg3[%44, %c0_13], %43 {strides = array<i32>} : memref<16x32xf32, #tpu.memory_space<vmem>>, vector<1x32xf32>,
    }
    %c4_i32_0 = arith.constant 4 : i32
    return
  }
  func.func @transform_0(%arg0: i32, %arg1: memref<16xi32, #tpu.memory_space<smem>>) -> (i32, i32) {
    %c0_i32 = arith.constant 0 : i32
    %c0_i32_0 = arith.constant 0 : i32
    %c0_i32_1 = arith.constant 0 : i32
    return %c0_i32, %c0_i32_0 : i32, i32
  }
  func.func @transform_1(%arg0: i32, %arg1: memref<16xi32, #tpu.memory_space<smem>>) -> (i32, i32) {
    %c0_i32 = arith.constant 0 : i32
    %c0_i32_0 = arith.constant 0 : i32
    return %arg0, %c0_i32 : i32, i32
  }
}

</mosaic_0001>

<llo_original>
// kernel: tpu_custom_call.1
$region0: #{tpu_custom_call.1}
  #allocation0 [shape = 'u32[]', space=smem, size = 0x4, offset = 0x4, fixed_abs, tag = 'smem constant byte address 0x4 - core index']
  #allocation1 [shape = 'u32[144,128]{1,0:T(1,128)}', space=vmem, size = 0x12000, scoped, tag = 'internal scratch']
  #allocation2 [shape = 's32[1]{0}', space=sflag, size = 0x4, scoped, tag = 'scoped memory for tpu_custom_call.1']
  #allocation3 [shape = 'u8[512]{0}', space=smem, size = 0x200, scoped, tag = 'prefetched SMEM operand 0']
  %s0 = inlined_call_operand.vmem [shape: s32[16], index: 0, kind: input, shape index: {}]
  %s1 = inlined_call_operand.vmem [shape: f32[64,32], index: 1, kind: input, shape index: {}]
  %s2 = inlined_call_operand.hbm [shape: f32[16,32], index: 2, kind: output, shape index: {}]
  %s3 = sld [smem:[#allocation0]]
  $region21: #{tpu_custom_call.1} parent=0
    _
  %s5 = ssub.s32 1, %s3
  %s6 = scalar_select 0, %s5, %s3
  %s7 = sshll.u32 %s0, 4
  %s8 = int_to_ptr.vmem [resolvable:$true] %s7
  %10 = dma.vmem_to_smem %s8, 16, [#allocation3], [#allocation2]
  %11 = dma.done [#allocation2], 16
  %12 = sfence
  $region1: #{tpu_custom_call.1} parent=0
    #allocation4 [shape = 'u8[8192]{0}', space=vmem, size = 0x2000, scoped, tag = 'output window, operand 0, single buffered']
    #allocation5 [shape = 's32[1]{0}', space=sflag, size = 0x4, scoped, tag = 'scoped memory for tpu_custom_call.1']
    %13 = vsyncpa [#allocation5], 0
    // Predicated region
    $region2: #{tpu_custom_call.1} parent=1 // pred_check
      _
    $region3: #{tpu_custom_call.1} parent=1 // pred_check_branch
      %15 = sbr.rel (0) target = $region5
    $region4: #{tpu_custom_call.1} parent=1 // pred_region
      _
    $region5: #{tpu_custom_call.1} parent=1 // pred_fallthru
      _
    %s16 = smul.u32 0, 16
    loop: start=0, step=1, limit=4
    $region6: #{tpu_custom_call.1} parent=1 // loop_pre_header
      _
    $region7: #{tpu_custom_call.1} parent=1 // loop_header
      %s18 = sphi 0, %s22
      %p19 = scmp.ge.s32.totalorder %s18, 4
    $region8: #{tpu_custom_call.1} parent=1 // loop_header_branch
      %21 = sbr.rel (%p19) target = $region12
    $region9: #{tpu_custom_call.1} parent=1 // loop_body
      %s23 = smul.u32 %s18, 4
      %s24 = sadd.s32 %s16, %s23
      %s25 = sld [smem:[#allocation3 + %s24]]
      %s26 = scalar_lea.vmem %s1, %s25
      %v27 = vld [vmem:[%s26] sm:$0x1]
      %v28 = vmul.f32 %v27, 5.656854
      %s29 = scalar_lea.vmem [#allocation4], %s23
      %vm30 = vcmask 253952
      %31 = vst.msk [vmem:[%s29] sm:$0x1] %vm30, %v28
      %s32 = sadd.s32 %s23, 1
      %s33 = sadd.s32 %s16, %s32
      %s34 = sld [smem:[#allocation3 + %s33]]
      %s35 = scalar_lea.vmem %s1, %s34
      %v36 = vld [vmem:[%s35] sm:$0x1]
      %v37 = vmul.f32 %v36, 5.656854
      %s38 = scalar_lea.vmem [#allocation4], %s32
      %39 = vst.msk [vmem:[%s38] sm:$0x1] %vm30, %v37
      %s40 = sadd.s32 %s23, 2
      %s41 = sadd.s32 %s16, %s40
      %s42 = sld [smem:[#allocation3 + %s41]]
      %s43 = scalar_lea.vmem %s1, %s42
      %v44 = vld [vmem:[%s43] sm:$0x1]
      %v45 = vmul.f32 %v44, 5.656854
      %s46 = scalar_lea.vmem [#allocation4], %s40
      %47 = vst.msk [vmem:[%s46] sm:$0x1] %vm30, %v45
      %s48 = sadd.s32 %s23, 3
      %s49 = sadd.s32 %s16, %s48
      %s50 = sld [smem:[#allocation3 + %s49]]
      %s51 = scalar_lea.vmem %s1, %s50
      %v52 = vld [vmem:[%s51] sm:$0x1]
      %v53 = vmul.f32 %v52, 5.656854
      %s54 = scalar_lea.vmem [#allocation4], %s48
      %55 = vst.msk [vmem:[%s54] sm:$0x1] %vm30, %v53
    $region10: #{tpu_custom_call.1} parent=1 // loop_footer
      %s22 = sadd.s32 1, %s18
    $region11: #{tpu_custom_call.1} parent=1 // loop_footer_branch
      %17 = sbr.rel target = $region7
    $region12: #{tpu_custom_call.1} parent=1 // loop_exit
      _
    // Predicated region
    $region13: #{tpu_custom_call.1} parent=1 // pred_check
      _
    $region14: #{tpu_custom_call.1} parent=1 // pred_check_branch
      %57 = sbr.rel (0) target = $region16
    $region15: #{tpu_custom_call.1} parent=1 // pred_region
      %s59 = ssub.s32 256, 256
      %60 = vsyncadd [#allocation5], %s59
      %s61 = sshll.u32 [#allocation4], 4
      %s62 = int_to_ptr.vmem [resolvable:$true] %s61
      %67 = dma.vmem_to_hbm [thread:$0]  %s62, 256, %s2, [#allocation5], 128, 128, 8
    $region16: #{tpu_custom_call.1} parent=1 // pred_fallthru
      _
    // Predicated region
    $region17: #{tpu_custom_call.1} parent=1 // pred_check
      _
    $region18: #{tpu_custom_call.1} parent=1 // pred_check_branch
      %69 = sbr.rel (0) target = $region20
    $region19: #{tpu_custom_call.1} parent=1 // pred_region
      %70 = dma.done [#allocation5], 256
    $region20: #{tpu_custom_call.1} parent=1 // pred_fallthru
      _
    %71 = vsyncpa [#allocation5], 1

</llo_original>
